<compile_context>
chip_gen: v5e
topology: v5e:2x2
jax: 0.10.0
libtpu: 0.0.40
codegen_flags: <defaults>
</compile_context>

<pallas_src>
import functools

import jax
import jax.numpy as jnp
from jax.experimental import pallas as pl
from jax.experimental.pallas import tpu as pltpu


def _round_up(v, m):
    return (v + m - 1) // m * m


def fc_kernel(x_ref, w1l_ref, b1l_ref, w2_ref, b2_ref, w3_ref, b3_ref, o_ref):
    """One (TM, Din) row-tile of x -> (TM, output_dim) row-tile of the output."""
    dp = w2_ref.shape[0]          # padded hidden width (multiple of 128)
    dout = o_ref.shape[1]         # true output_dim (may be < 128 -> masked vst)

    x = x_ref[...].astype(jnp.bfloat16)        # bf16 into the MXU, f32 accumulation

    # Fused first layer + skip: x @ [w1 | wl]  (single MXU pass over x, 2*Dp wide output)
    z = jnp.dot(x, w1l_ref[...], preferred_element_type=jnp.float32) + b1l_ref[...]
    h = jnp.maximum(z[:, :dp], 0.0)            # fc branch after first Linear+ReLU
    skip = z[:, dp:dp + dout]                  # linear skip branch (no activation)

    # Second and third Linear+ReLU of the fc branch.
    h = jnp.dot(h.astype(jnp.bfloat16), w2_ref[...],
                preferred_element_type=jnp.float32) + b2_ref[...]
    h = jnp.maximum(h, 0.0)
    h = jnp.dot(h.astype(jnp.bfloat16), w3_ref[...],
                preferred_element_type=jnp.float32) + b3_ref[...]
    h = jnp.maximum(h, 0.0)

    # Store only the real output lanes (no post-kernel slice / padded writeback).
    o_ref[...] = (h[:, :dout] + skip).astype(o_ref.dtype)


def init_fc_params(key, input_dim, output_dim):
    """Logical f32 params mimicking PyTorch nn.Linear default init.
    Weights stored as (in_features, out_features) — transposed vs. PyTorch."""
    ks = jax.random.split(key, 8)

    def lin(kw, kb, fan_in, fan_out):
        bound = 1.0 / jnp.sqrt(fan_in)
        w = jax.random.uniform(kw, (fan_in, fan_out), jnp.float32, -bound, bound)
        b = jax.random.uniform(kb, (1, fan_out), jnp.float32, -bound, bound)
        return w, b

    w1, b1 = lin(ks[0], ks[1], input_dim, output_dim)
    w2, b2 = lin(ks[2], ks[3], output_dim, output_dim)
    w3, b3 = lin(ks[4], ks[5], output_dim, output_dim)
    wl, bl = lin(ks[6], ks[7], input_dim, output_dim)
    return dict(w1=w1, b1=b1, w2=w2, b2=b2, w3=w3, b3=b3, wl=wl, bl=bl)


def prepare_params(p, output_dim):
    """Pad feature dims to a multiple of 128 (lane-dense), fuse w1|wl, cast weights to bf16."""
    dp = _round_up(output_dim, 128)
    din = p["w1"].shape[0]

    def pad_to(a, shape):
        return jnp.pad(a, [(0, t - s) for s, t in zip(a.shape, shape)])

    w1 = pad_to(p["w1"], (din, dp))
    wl = pad_to(p["wl"], (din, dp))
    b1 = pad_to(p["b1"], (1, dp))
    bl = pad_to(p["bl"], (1, dp))
    w2 = pad_to(p["w2"], (dp, dp))
    b2 = pad_to(p["b2"], (1, dp))
    w3 = pad_to(p["w3"], (dp, dp))
    b3 = pad_to(p["b3"], (1, dp))

    return dict(
        w1l=jnp.concatenate([w1, wl], axis=1).astype(jnp.bfloat16),   # (din, 2*dp)
        b1l=jnp.concatenate([b1, bl], axis=1).astype(jnp.float32),    # (1, 2*dp)
        w2=w2.astype(jnp.bfloat16), b2=b2.astype(jnp.float32),
        w3=w3.astype(jnp.bfloat16), b3=b3.astype(jnp.float32),
        dp=dp, out_dim=output_dim,
    )


def _choose_tm(n, din, dp, out_dim, x_itemsize, out_itemsize,
               vmem_budget_bytes, weights_bytes):
    """Pick the row-tile size from a VMEM working-set budget (v7x-safe by default)."""
    # Per-row VMEM estimate:
    #   x tile       : double-buffered -> 2 * din * x_itemsize
    #   out tile     : double-buffered -> 2 * out_dim * out_itemsize
    #   intermediates: z (2*dp), h (dp), skip (dp) in f32 + bf16 temps of x and h
    per_row = (2 * din * x_itemsize
               + 2 * out_dim * out_itemsize
               + 4 * (2 * dp + dp + dp)
               + 2 * (din + dp))
    budget = max(vmem_budget_bytes - weights_bytes, 1 << 20)
    tm = max(256, min(budget // per_row, 8192))
    # Megacore pipelining (v7x, 2 TCs): keep >= 4 grid steps for large N.
    tm = min(tm, max(256, _round_up(pl.cdiv(n, 4), 8)))
    # Never larger than the (sublane-padded) row count.
    tm = min(tm, _round_up(n, 8))
    return int(_round_up(tm, 8))


def fc_forward(x, prep, *, out_dtype=jnp.float32,
               vmem_budget_bytes=24 * 1024 * 1024,
               vmem_limit_bytes=32 * 1024 * 1024):
    """x: (N, input_dim) f32 or bf16 -> (N, output_dim) `out_dtype`.

    Defaults are sized for v7x (64 MiB physical VMEM).  On v5e/v6e (128 MiB) both
    budgets can be raised (e.g. 64-96 MiB) for fewer, larger grid steps.
    """
    n, din = x.shape
    dp = prep["dp"]
    out_dim = prep["out_dim"]

    weights_bytes = sum(int(prep[k].size) * prep[k].dtype.itemsize
                        for k in ("w1l", "b1l", "w2", "b2", "w3", "b3"))
    tm = _choose_tm(n, din, dp, out_dim,
                    x_itemsize=x.dtype.itemsize,
                    out_itemsize=jnp.dtype(out_dtype).itemsize,
                    vmem_budget_bytes=vmem_budget_bytes,
                    weights_bytes=weights_bytes)
    grid = (pl.cdiv(n, tm),)

    # Weights/biases: constant block index -> resident in VMEM across grid iterations.
    resident = lambda shape: pl.BlockSpec(shape, lambda i: (0, 0))

    # Output block's last dim equals the full array last dim (out_dim) -> legal BlockSpec
    # even when out_dim < 128; masked stores in exchange for 4x less output HBM traffic.
    return pl.pallas_call(
        fc_kernel,
        out_shape=jax.ShapeDtypeStruct((n, out_dim), out_dtype),
        grid=grid,
        in_specs=[
            pl.BlockSpec((tm, din), lambda i: (i, 0)),
            resident(prep["w1l"].shape), resident(prep["b1l"].shape),
            resident(prep["w2"].shape), resident(prep["b2"].shape),
            resident(prep["w3"].shape), resident(prep["b3"].shape),
        ],
        out_specs=pl.BlockSpec((tm, out_dim), lambda i: (i, 0)),
        compiler_params=pltpu.CompilerParams(
            dimension_semantics=("parallel",),          # 2x on v7x (2 TCs), harmless elsewhere
            vmem_limit_bytes=vmem_limit_bytes,
        ),
    )(x, prep["w1l"], prep["b1l"], prep["w2"], prep["b2"], prep["w3"], prep["b3"])


def fc_reference_bf16(x, p):
    """Pure-JAX reference using the same bf16-matmul / f32-accumulate recipe as the kernel."""
    dot = lambda a, b: jnp.dot(a.astype(jnp.bfloat16), b.astype(jnp.bfloat16),
                               preferred_element_type=jnp.float32)
    relu = lambda v: jnp.maximum(v, 0.0)
    h = relu(dot(x, p["w1"]) + p["b1"])
    h = relu(dot(h, p["w2"]) + p["b2"])
    h = relu(dot(h, p["w3"]) + p["b3"])
    return h + dot(x, p["wl"]) + p["bl"]


def fc_reference_f32(x, p):
    relu = lambda v: jnp.maximum(v, 0.0)
    h = relu(x @ p["w1"] + p["b1"])
    h = relu(h @ p["w2"] + p["b2"])
    h = relu(h @ p["w3"] + p["b3"])
    return h + (x @ p["wl"] + p["bl"])


if __name__ == "__main__":
    key = jax.random.PRNGKey(0)
    k_x, k_p, k_x2 = jax.random.split(key, 3)

    # Demo: 1024 rows (nodes), 64 input features, 32 output features.
    n, input_dim, output_dim = 1024, 64, 32
    x = jax.random.normal(k_x, (n, input_dim), jnp.float32)

    params = init_fc_params(k_p, input_dim, output_dim)
    prep = prepare_params(params, output_dim)

    fwd = jax.jit(functools.partial(fc_forward, prep=prep))
    out = jax.block_until_ready(fwd(x))
    assert out.shape == (n, output_dim) and out.dtype == jnp.float32

    ref_bf16 = fc_reference_bf16(x, params)
    ref_f32 = fc_reference_f32(x, params)
    max_err_bf16 = float(jnp.max(jnp.abs(out - ref_bf16)))
    max_err_f32 = float(jnp.max(jnp.abs(out - ref_f32)))
    assert jnp.allclose(out, ref_bf16, atol=1e-3, rtol=1e-3), (
        f"Pallas output mismatch vs bf16 reference (max abs err {max_err_bf16})")
    # f32 reference only sanity-checked loosely (bf16 MXU inputs by design).
    assert max_err_f32 < 0.25, f"Pallas output far from f32 reference ({max_err_f32})"

    # Ragged last row-tile check (N not a multiple of TM).
    x2 = jax.random.normal(k_x2, (300, input_dim), jnp.float32)
    out2 = jax.block_until_ready(fwd(x2))
    ref2 = fc_reference_bf16(x2, params)
    assert out2.shape == (300, output_dim)
    assert jnp.allclose(out2, ref2, atol=1e-3, rtol=1e-3), "ragged-tile mismatch"

    print("KERNEL_OK")
</pallas_src>

<mosaic_0001>
module attributes {stable_mosaic.version = 11 : i64} {
  func.func @fc_kernel(%arg0: i32, %arg1: memref<256x64xf32, #tpu.memory_space<vmem>>, %arg2: memref<64x256xbf16, #tpu.memory_space<vmem>>, %arg3: memref<1x256xf32, #tpu.memory_space<vmem>>, %arg4: memref<128x128xbf16, #tpu.memory_space<vmem>>, %arg5: memref<1x128xf32, #tpu.memory_space<vmem>>, %arg6: memref<128x128xbf16, #tpu.memory_space<vmem>>, %arg7: memref<1x128xf32, #tpu.memory_space<vmem>>, %arg8: memref<256x32xf32, #tpu.memory_space<vmem>>) attributes {dimension_semantics = [#tpu.dimension_semantics<parallel>], iteration_bounds = array<i64: 4>, scalar_prefetch = 0 : i64, scratch_operands = 0 : i64, tpu.core_type = #tpu.core_type<tc>, window_params = [{transform_indices = @transform_0, window_bounds = array<i64: 256, 64>}, {pipeline_mode = #tpu.pipeline_mode<synchronous>, transform_indices = @transform_1, window_bounds = array<i64: 64, 256>}, {pipeline_mode = #tpu.pipeline_mode<synchronous>, transform_indices = @transform_2, window_bounds = array<i64: 1, 256>}, {pipeline_mode = #tpu.pipeline_mode<synchronous>, transform_indices = @transform_3, window_bounds = array<i64: 128, 128>}, {pipeline_mode = #tpu.pipeline_mode<synchronous>, transform_indices = @transform_4, window_bounds = array<i64: 1, 128>}, {pipeline_mode = #tpu.pipeline_mode<synchronous>, transform_indices = @transform_5, window_bounds = array<i64: 128, 128>}, {pipeline_mode = #tpu.pipeline_mode<synchronous>, transform_indices = @transform_6, window_bounds = array<i64: 1, 128>}, {transform_indices = @transform_7, window_bounds = array<i64: 256, 32>}]} {
    %c0 = arith.constant 0 : index
    %c0_0 = arith.constant 0 : index
    %0 = vector.load %arg1[%c0, %c0_0] : memref<256x64xf32, #tpu.memory_space<vmem>>, vector<256x64xf32>
    %1 = arith.truncf %0 : vector<256x64xf32> to vector<256x64xbf16>
    %c0_1 = arith.constant 0 : index
    %c0_2 = arith.constant 0 : index
    %2 = vector.load %arg2[%c0_1, %c0_2] : memref<64x256xbf16, #tpu.memory_space<vmem>>, vector<64x256xbf16>
    %cst = arith.constant dense<0.000000e+00> : vector<256x256xf32>
    %3 = tpu.matmul %1, %2, %cst {dimension_numbers = #tpu.dot_dimension_numbers<[1], [0], [0], [1], [0, 0, 1, 1], [], []>} : vector<256x64xbf16>, vector<64x256xbf16>, vector<256x256xf32> -> vector<256x256xf32>
    %c0_3 = arith.constant 0 : index
    %c0_4 = arith.constant 0 : index
    %4 = vector.load %arg3[%c0_3, %c0_4] : memref<1x256xf32, #tpu.memory_space<vmem>>, vector<1x256xf32>
    %5 = vector.broadcast %4 : vector<1x256xf32> to vector<256x256xf32>
    %6 = arith.addf %3, %5 : vector<256x256xf32>
    %7 = vector.extract_strided_slice %6 {offsets = [0, 0], sizes = [256, 128], strides = [1, 1]} : vector<256x256xf32> to vector<256x128xf32>
    %cst_5 = arith.constant 0.000000e+00 : f32
    %8 = vector.broadcast %cst_5 : f32 to vector<256x128xf32>
    %9 = arith.maximumf %7, %8 : vector<256x128xf32>
    %10 = vector.extract_strided_slice %6 {offsets = [0, 128], sizes = [256, 32], strides = [1, 1]} : vector<256x256xf32> to vector<256x32xf32>
    %11 = arith.truncf %9 : vector<256x128xf32> to vector<256x128xbf16>
    %c0_6 = arith.constant 0 : index
    %c0_7 = arith.constant 0 : index
    %12 = vector.load %arg4[%c0_6, %c0_7] : memref<128x128xbf16, #tpu.memory_space<vmem>>, vector<128x128xbf16>
    %cst_8 = arith.constant dense<0.000000e+00> : vector<256x128xf32>
    %13 = tpu.matmul %11, %12, %cst_8 {dimension_numbers = #tpu.dot_dimension_numbers<[1], [0], [0], [1], [0, 0, 1, 1], [], []>} : vector<256x128xbf16>, vector<128x128xbf16>, vector<256x128xf32> -> vector<256x128xf32>
    %c0_9 = arith.constant 0 : index
    %c0_10 = arith.constant 0 : index
    %14 = vector.load %arg5[%c0_9, %c0_10] : memref<1x128xf32, #tpu.memory_space<vmem>>, vector<1x128xf32>
    %15 = vector.broadcast %14 : vector<1x128xf32> to vector<256x128xf32>
    %16 = arith.addf %13, %15 : vector<256x128xf32>
    %cst_11 = arith.constant 0.000000e+00 : f32
    %17 = vector.broadcast %cst_11 : f32 to vector<256x128xf32>
    %18 = arith.maximumf %16, %17 : vector<256x128xf32>
    %19 = arith.truncf %18 : vector<256x128xf32> to vector<256x128xbf16>
    %c0_12 = arith.constant 0 : index
    %c0_13 = arith.constant 0 : index
    %20 = vector.load %arg6[%c0_12, %c0_13] : memref<128x128xbf16, #tpu.memory_space<vmem>>, vector<128x128xbf16>
    %cst_14 = arith.constant dense<0.000000e+00> : vector<256x128xf32>
    %21 = tpu.matmul %19, %20, %cst_14 {dimension_numbers = #tpu.dot_dimension_numbers<[1], [0], [0], [1], [0, 0, 1, 1], [], []>} : vector<256x128xbf16>, vector<128x128xbf16>, vector<256x128xf32> -> vector<256x128xf32>
    %c0_15 = arith.constant 0 : index
    %c0_16 = arith.constant 0 : index
    %22 = vector.load %arg7[%c0_15, %c0_16] : memref<1x128xf32, #tpu.memory_space<vmem>>, vector<1x128xf32>
    %23 = vector.broadcast %22 : vector<1x128xf32> to vector<256x128xf32>
    %24 = arith.addf %21, %23 : vector<256x128xf32>
    %cst_17 = arith.constant 0.000000e+00 : f32
    %25 = vector.broadcast %cst_17 : f32 to vector<256x128xf32>
    %26 = arith.maximumf %24, %25 : vector<256x128xf32>
    %27 = vector.extract_strided_slice %26 {offsets = [0, 0], sizes = [256, 32], strides = [1, 1]} : vector<256x128xf32> to vector<256x32xf32>
    %28 = arith.addf %27, %10 : vector<256x32xf32>
    %c0_18 = arith.constant 0 : index
    %c0_19 = arith.constant 0 : index
    %29 = vector.load %arg8[%c0_18, %c0_19] : memref<256x32xf32, #tpu.memory_space<vmem>>, vector<256x32xf32>
    tpu.vector_store %arg8[%c0_18, %c0_19], %28 {strides = array<i32>} : memref<256x32xf32, #tpu.memory_space<vmem>>, vector<256x32xf32>,
    return
  }
  func.func @transform_0(%arg0: i32) -> (i32, i32) {
    %c0_i32 = arith.constant 0 : i32
    %c0_i32_0 = arith.constant 0 : i32
    return %arg0, %c0_i32 : i32, i32
  }
  func.func @transform_1(%arg0: i32) -> (i32, i32) {
    %c0_i32 = arith.constant 0 : i32
    %c0_i32_0 = arith.constant 0 : i32
    %c0_i32_1 = arith.constant 0 : i32
    return %c0_i32, %c0_i32_0 : i32, i32
  }
  func.func @transform_2(%arg0: i32) -> (i32, i32) {
    %c0_i32 = arith.constant 0 : i32
    %c0_i32_0 = arith.constant 0 : i32
    %c0_i32_1 = arith.constant 0 : i32
    return %c0_i32, %c0_i32_0 : i32, i32
  }
  func.func @transform_3(%arg0: i32) -> (i32, i32) {
    %c0_i32 = arith.constant 0 : i32
    %c0_i32_0 = arith.constant 0 : i32
    %c0_i32_1 = arith.constant 0 : i32
    return %c0_i32, %c0_i32_0 : i32, i32
  }
  func.func @transform_4(%arg0: i32) -> (i32, i32) {
    %c0_i32 = arith.constant 0 : i32
    %c0_i32_0 = arith.constant 0 : i32
    %c0_i32_1 = arith.constant 0 : i32
    return %c0_i32, %c0_i32_0 : i32, i32
  }
  func.func @transform_5(%arg0: i32) -> (i32, i32) {
    %c0_i32 = arith.constant 0 : i32
    %c0_i32_0 = arith.constant 0 : i32
    %c0_i32_1 = arith.constant 0 : i32
    return %c0_i32, %c0_i32_0 : i32, i32
  }
  func.func @transform_6(%arg0: i32) -> (i32, i32) {
    %c0_i32 = arith.constant 0 : i32
    %c0_i32_0 = arith.constant 0 : i32
    %c0_i32_1 = arith.constant 0 : i32
    return %c0_i32, %c0_i32_0 : i32, i32
  }
  func.func @transform_7(%arg0: i32) -> (i32, i32) {
    %c0_i32 = arith.constant 0 : i32
    %c0_i32_0 = arith.constant 0 : i32
    return %arg0, %c0_i32 : i32, i32
  }
}

</mosaic_0001>

<llo_original>
// kernel: fc_forward.1
$region0: #{fc_forward.1}
  #allocation0 [shape = 'u32[]', space=smem, size = 0x4, offset = 0x4, fixed_abs, tag = 'smem constant byte address 0x4 - core index']
  #allocation1 [shape = 'u32[72,128]{1,0:T(1,128)}', space=vmem, size = 0x9000, scoped, tag = 'internal scratch']
  %s0 = inlined_call_operand.vmem [shape: f32[1024,64], index: 0, kind: input, shape index: {}]
  %s1 = inlined_call_operand.vmem [shape: bf16[64,256], index: 1, kind: input, shape index: {}]
  %s2 = inlined_call_operand.vmem [shape: f32[1,256], index: 2, kind: input, shape index: {}]
  %s3 = inlined_call_operand.vmem [shape: bf16[128,128], index: 3, kind: input, shape index: {}]
  %s4 = inlined_call_operand.vmem [shape: f32[1,128], index: 4, kind: input, shape index: {}]
  %s5 = inlined_call_operand.vmem [shape: bf16[128,128], index: 5, kind: input, shape index: {}]
  %s6 = inlined_call_operand.vmem [shape: f32[1,128], index: 6, kind: input, shape index: {}]
  %s7 = inlined_call_operand.vmem [shape: f32[1024,32], index: 7, kind: output, shape index: {}]
  %s8 = sld [smem:[#allocation0]]
  $region61: #{fc_forward.1} parent=0
    _
  %s10 = ssub.s32 1, %s8
  %s11 = scalar_select 0, %s10, %s8
  loop: start=0, step=1, limit=6
  $region2: #{fc_forward.1} parent=0 // loop_pre_header
    _
  $region3: #{fc_forward.1} parent=0 // loop_header
    %s13 = sphi 0, %s17
    %p14 = scmp.ge.s32.totalorder %s13, 6
    %s23 = sphi 0, %s25
    %s26 = sphi 0, %s23
    %s27 = sphi 0, %s26
    %s43 = sphi 0, %s27
    %s47 = sphi 0, %s47
    %s49 = sphi 0, %s47
    %s50 = sphi 0, %s49
    %s64 = sphi 0, %s50
    %s68 = sphi 0, %s68
    %s70 = sphi 0, %s68
    %s71 = sphi 0, %s70
    %s85 = sphi 0, %s71
    %s89 = sphi 0, %s89
    %s91 = sphi 0, %s89
    %s92 = sphi 0, %s91
    %s106 = sphi 0, %s92
    %s110 = sphi 0, %s110
    %s112 = sphi 0, %s110
    %s113 = sphi 0, %s112
    %s127 = sphi 0, %s113
    %s131 = sphi 0, %s131
    %s133 = sphi 0, %s131
    %s134 = sphi 0, %s133
    %s148 = sphi 0, %s134
    %s152 = sphi 0, %s152
    %s154 = sphi 0, %s152
    %s155 = sphi 0, %s154
    %s169 = sphi 0, %s155
    %s175 = sphi 0, %s177
    %s178 = sphi 0, %s175
    %s179 = sphi 0, %s178
    %s195 = sphi 0, %s179
  $region4: #{fc_forward.1} parent=0 // loop_header_branch
    %16 = sbr.rel (%p14) target = $region8
  $region5: #{fc_forward.1} parent=0 // loop_body
    %s18 = ssub.s32 %s13, 1
    %s19 = ssub.s32 %s13, 2
    %s20 = sadd.s32 %s13, 1
    %s21 = ssub.s32 %s13, %s20
    %p22 = scmp.eq.s32.totalorder %s21, 0
    %s24 = sadd.s32 %s23, 1
    %s25 = scalar_select %p22, %s23, %s24
    %p28 = pneg %p22
    %p29 = scmp.eq.s32.totalorder %s13, 3
    %p30 = por %p28, %p29
    %p31 = scmp.ne.s32.totalorder %s23, %s26
    %p32 = scmp.eq.s32.totalorder %s13, 0
    %p33 = por %p31, %p32
    %p34 = scmp.ne.s32.totalorder %s23, %s26
    %p35 = scmp.eq.s32.totalorder %s18, 3
    %p36 = por %p34, %p35
    %p37 = scmp.ne.s32.totalorder %s26, %s27
    %p38 = scmp.eq.s32.totalorder %s18, 0
    %p39 = por %p37, %p38
    %p40 = scmp.ne.s32.totalorder %s26, %s27
    %p41 = scmp.eq.s32.totalorder %s19, 3
    %p42 = por %p40, %p41
    %p44 = scmp.ne.s32.totalorder %s27, %s43
    %p45 = scmp.eq.s32.totalorder %s19, 0
    %p46 = por %p44, %p45
    %s48 = sadd.s32 %s47, 1
    %p51 = scmp.eq.s32.totalorder %s13, 3
    %p52 = scmp.ne.s32.totalorder %s47, %s49
    %p53 = scmp.eq.s32.totalorder %s13, 0
    %p54 = por %p52, %p53
    %p55 = scmp.ne.s32.totalorder %s47, %s49
    %p56 = scmp.eq.s32.totalorder %s18, 3
    %p57 = por %p55, %p56
    %p58 = scmp.ne.s32.totalorder %s49, %s50
    %p59 = scmp.eq.s32.totalorder %s18, 0
    %p60 = por %p58, %p59
    %p61 = scmp.ne.s32.totalorder %s49, %s50
    %p62 = scmp.eq.s32.totalorder %s19, 3
    %p63 = por %p61, %p62
    %p65 = scmp.ne.s32.totalorder %s50, %s64
    %p66 = scmp.eq.s32.totalorder %s19, 0
    %p67 = por %p65, %p66
    %s69 = sadd.s32 %s68, 1
    %p72 = scmp.eq.s32.totalorder %s13, 3
    %p73 = scmp.ne.s32.totalorder %s68, %s70
    %p74 = scmp.eq.s32.totalorder %s13, 0
    %p75 = por %p73, %p74
    %p76 = scmp.ne.s32.totalorder %s68, %s70
    %p77 = scmp.eq.s32.totalorder %s18, 3
    %p78 = por %p76, %p77
    %p79 = scmp.ne.s32.totalorder %s70, %s71
    %p80 = scmp.eq.s32.totalorder %s18, 0
    %p81 = por %p79, %p80
    %p82 = scmp.ne.s32.totalorder %s70, %s71
    %p83 = scmp.eq.s32.totalorder %s19, 3
    %p84 = por %p82, %p83
    %p86 = scmp.ne.s32.totalorder %s71, %s85
    %p87 = scmp.eq.s32.totalorder %s19, 0
    %p88 = por %p86, %p87
    %s90 = sadd.s32 %s89, 1
    %p93 = scmp.eq.s32.totalorder %s13, 3
    %p94 = scmp.ne.s32.totalorder %s89, %s91
    %p95 = scmp.eq.s32.totalorder %s13, 0
    %p96 = por %p94, %p95
    %p97 = scmp.ne.s32.totalorder %s89, %s91
    %p98 = scmp.eq.s32.totalorder %s18, 3
    %p99 = por %p97, %p98
    %p100 = scmp.ne.s32.totalorder %s91, %s92
    %p101 = scmp.eq.s32.totalorder %s18, 0
    %p102 = por %p100, %p101
    %p103 = scmp.ne.s32.totalorder %s91, %s92
    %p104 = scmp.eq.s32.totalorder %s19, 3
    %p105 = por %p103, %p104
    %p107 = scmp.ne.s32.totalorder %s92, %s106
    %p108 = scmp.eq.s32.totalorder %s19, 0
    %p109 = por %p107, %p108
    %s111 = sadd.s32 %s110, 1
    %p114 = scmp.eq.s32.totalorder %s13, 3
    %p115 = scmp.ne.s32.totalorder %s110, %s112
    %p116 = scmp.eq.s32.totalorder %s13, 0
    %p117 = por %p115, %p116
    %p118 = scmp.ne.s32.totalorder %s110, %s112
    %p119 = scmp.eq.s32.totalorder %s18, 3
    %p120 = por %p118, %p119
    %p121 = scmp.ne.s32.totalorder %s112, %s113
    %p122 = scmp.eq.s32.totalorder %s18, 0
    %p123 = por %p121, %p122
    %p124 = scmp.ne.s32.totalorder %s112, %s113
    %p125 = scmp.eq.s32.totalorder %s19, 3
    %p126 = por %p124, %p125
    %p128 = scmp.ne.s32.totalorder %s113, %s127
    %p129 = scmp.eq.s32.totalorder %s19, 0
    %p130 = por %p128, %p129
    %s132 = sadd.s32 %s131, 1
    %p135 = scmp.eq.s32.totalorder %s13, 3
    %p136 = scmp.ne.s32.totalorder %s131, %s133
    %p137 = scmp.eq.s32.totalorder %s13, 0
    %p138 = por %p136, %p137
    %p139 = scmp.ne.s32.totalorder %s131, %s133
    %p140 = scmp.eq.s32.totalorder %s18, 3
    %p141 = por %p139, %p140
    %p142 = scmp.ne.s32.totalorder %s133, %s134
    %p143 = scmp.eq.s32.totalorder %s18, 0
    %p144 = por %p142, %p143
    %p145 = scmp.ne.s32.totalorder %s133, %s134
    %p146 = scmp.eq.s32.totalorder %s19, 3
    %p147 = por %p145, %p146
    %p149 = scmp.ne.s32.totalorder %s134, %s148
    %p150 = scmp.eq.s32.totalorder %s19, 0
    %p151 = por %p149, %p150
    %s153 = sadd.s32 %s152, 1
    %p156 = scmp.eq.s32.totalorder %s13, 3
    %p157 = scmp.ne.s32.totalorder %s152, %s154
    %p158 = scmp.eq.s32.totalorder %s13, 0
    %p159 = por %p157, %p158
    %p160 = scmp.ne.s32.totalorder %s152, %s154
    %p161 = scmp.eq.s32.totalorder %s18, 3
    %p162 = por %p160, %p161
    %p163 = scmp.ne.s32.totalorder %s154, %s155
    %p164 = scmp.eq.s32.totalorder %s18, 0
    %p165 = por %p163, %p164
    %p166 = scmp.ne.s32.totalorder %s154, %s155
    %p167 = scmp.eq.s32.totalorder %s19, 3
    %p168 = por %p166, %p167
    %p170 = scmp.ne.s32.totalorder %s155, %s169
    %p171 = scmp.eq.s32.totalorder %s19, 0
    %p172 = por %p170, %p171
    %s173 = ssub.s32 %s13, %s20
    %p174 = scmp.eq.s32.totalorder %s173, 0
    %s176 = sadd.s32 %s175, 1
    %s177 = scalar_select %p174, %s175, %s176
    %p180 = pneg %p174
    %p181 = scmp.eq.s32.totalorder %s13, 3
    %p182 = por %p180, %p181
    %p183 = scmp.ne.s32.totalorder %s175, %s178
    %p184 = scmp.eq.s32.totalorder %s13, 0
    %p185 = por %p183, %p184
    %p186 = scmp.ne.s32.totalorder %s175, %s178
    %p187 = scmp.eq.s32.totalorder %s18, 3
    %p188 = por %p186, %p187
    %p189 = scmp.ne.s32.totalorder %s178, %s179
    %p190 = scmp.eq.s32.totalorder %s18, 0
    %p191 = por %p189, %p190
    %p192 = scmp.ne.s32.totalorder %s178, %s179
    %p193 = scmp.eq.s32.totalorder %s19, 3
    %p194 = por %p192, %p193
    %p196 = scmp.ne.s32.totalorder %s179, %s195
    %p197 = scmp.eq.s32.totalorder %s19, 0
    %p198 = por %p196, %p197
    %p199 = scmp.le.s32.totalorder 1, %s13
    %p200 = scmp.lt.s32.totalorder %s13, 5
    %p201 = pnand %p199, %p200
    %p202 = pneg %p201
    // Predicated region
    $region9: #{fc_forward.1} parent=5 // pred_check
      _
    $region10: #{fc_forward.1} parent=5 // pred_check_branch
      %204 = sbr.rel (%p201) target = $region12
    $region11: #{fc_forward.1} parent=5 // pred_region
      %s205 = ssub.s32 %s13, 1
      // Predicated region
      $region13: #{fc_forward.1} parent=11 // pred_check
        %p206 = pneg %p60
      $region14: #{fc_forward.1} parent=11 // pred_check_branch
        %208 = sbr.rel (%p206) target = $region16
      $region15: #{fc_forward.1} parent=11 // pred_region
        _
      $region16: #{fc_forward.1} parent=11 // pred_fallthru
        _
      // Predicated region
      $region17: #{fc_forward.1} parent=11 // pred_check
        %p209 = pneg %p81
      $region18: #{fc_forward.1} parent=11 // pred_check_branch
        %211 = sbr.rel (%p209) target = $region20
      $region19: #{fc_forward.1} parent=11 // pred_region
        _
      $region20: #{fc_forward.1} parent=11 // pred_fallthru
        _
      // Predicated region
      $region21: #{fc_forward.1} parent=11 // pred_check
        %p212 = pneg %p102
      $region22: #{fc_forward.1} parent=11 // pred_check_branch
        %214 = sbr.rel (%p212) target = $region24
      $region23: #{fc_forward.1} parent=11 // pred_region
        _
      $region24: #{fc_forward.1} parent=11 // pred_fallthru
        _
      // Predicated region
      $region25: #{fc_forward.1} parent=11 // pred_check
        %p215 = pneg %p123
      $region26: #{fc_forward.1} parent=11 // pred_check_branch
        %217 = sbr.rel (%p215) target = $region28
      $region27: #{fc_forward.1} parent=11 // pred_region
        _
      $region28: #{fc_forward.1} parent=11 // pred_fallthru
        _
      // Predicated region
      $region29: #{fc_forward.1} parent=11 // pred_check
        %p218 = pneg %p144
      $region30: #{fc_forward.1} parent=11 // pred_check_branch
        %220 = sbr.rel (%p218) target = $region32
      $region31: #{fc_forward.1} parent=11 // pred_region
        _
      $region32: #{fc_forward.1} parent=11 // pred_fallthru
        _
      // Predicated region
      $region33: #{fc_forward.1} parent=11 // pred_check
        %p221 = pneg %p165
      $region34: #{fc_forward.1} parent=11 // pred_check_branch
        %223 = sbr.rel (%p221) target = $region36
      $region35: #{fc_forward.1} parent=11 // pred_region
        _
      $region36: #{fc_forward.1} parent=11 // pred_fallthru
        _
    $region12: #{fc_forward.1} parent=5 // pred_fallthru
      _
    %p224 = scmp.lt.s32.totalorder %s13, 4
    // Predicated region
    $region37: #{fc_forward.1} parent=5 // pred_check
      %p225 = pneg %p224
    $region38: #{fc_forward.1} parent=5 // pred_check_branch
      %227 = sbr.rel (%p225) target = $region40
    $region39: #{fc_forward.1} parent=5 // pred_region
      // Predicated region
      $region41: #{fc_forward.1} parent=39 // pred_check
        %p228 = pneg %p33
      $region42: #{fc_forward.1} parent=39 // pred_check_branch
        %230 = sbr.rel (%p228) target = $region44
      $region43: #{fc_forward.1} parent=39 // pred_region
        %s231 = smul.u32 32, %s13
        %p232 = scmp.lt.s32.totalorder %s231, 127
        %s233 = scalar_select %p232, %s231, 127
        %s234 = smul.addr %s233, 8
        %s235 = scalar_lea.vmem %s0, %s234
        %s236 = smul.u32 32, %s13
      $region44: #{fc_forward.1} parent=39 // pred_fallthru
        _
    $region40: #{fc_forward.1} parent=5 // pred_fallthru
      _
    %p237 = scmp.le.s32.totalorder 1, %s13
    %p238 = scmp.lt.s32.totalorder %s13, 5
    %p239 = pnand %p237, %p238
    %p240 = pneg %p239
    // Predicated region
    $region45: #{fc_forward.1} parent=5 // pred_check
      _
    $region46: #{fc_forward.1} parent=5 // pred_check_branch
      %242 = sbr.rel (%p239) target = $region48
    $region47: #{fc_forward.1} parent=5 // pred_region
      %s243 = ssub.s32 %s13, 1
      %s244 = smul.u32 32, %s18
      %p245 = scmp.lt.s32.totalorder %s244, 127
      %s246 = scalar_select %p245, %s244, 127
      %s247 = smul.addr %s246, 8
      %s248 = scalar_lea.vmem %s0, %s247
      %p249 = pneg %p39
      %p250 = pneg %p36
      %p251 = pneg %p60
      %p252 = pneg %p57
      %p253 = pneg %p81
      %p254 = pneg %p78
      %p255 = pneg %p102
      %p256 = pneg %p99
      %p257 = pneg %p123
      %p258 = pneg %p120
      %p259 = pneg %p144
      %p260 = pneg %p141
      %p261 = pneg %p165
      %p262 = pneg %p162
      %p263 = pneg %p191
      %p264 = pneg %p188
      %s265 = smul.u32 32, %s18
      %p266 = scmp.lt.s32.totalorder %s265, 127
      %s267 = scalar_select %p266, %s265, 127
      %s268 = smul.addr %s267, 8
      %s269 = scalar_lea.vmem %s7, %s268
      %s270 = smul.u32 32, %s18
      %p271 = scmp.lt.s32.totalorder %s270, 127
      %s272 = scalar_select %p271, %s270, 127
      %s273 = smul.addr %s272, 8
      %s274 = scalar_lea.vmem %s0, %s273
      %s275 = smul.u32 32, %s18
      %s276 = smul.u32 32, %s18
      %p277 = scmp.lt.s32.totalorder %s276, 127
      %s278 = scalar_select %p277, %s276, 127
      %s279 = smul.addr %s278, 8
      %s280 = scalar_lea.vmem %s7, %s279
      %s281 = smul.u32 32, %s18
      %v283 = vld [vmem:[%s274] sm:$0xff]
      %v284 = vld [vmem:[%s274 + $0x8] sm:$0xff]
      %v285 = vld [vmem:[%s274 + $0x10] sm:$0xff]
      %v286 = vld [vmem:[%s274 + $0x18] sm:$0xff]
      %v287 = vld [vmem:[%s274 + $0x20] sm:$0xff]
      %v288 = vld [vmem:[%s274 + $0x28] sm:$0xff]
      %v289 = vld [vmem:[%s274 + $0x30] sm:$0xff]
      %v290 = vld [vmem:[%s274 + $0x38] sm:$0xff]
      %v291 = vld [vmem:[%s274 + $0x40] sm:$0xff]
      %v292 = vld [vmem:[%s274 + $0x48] sm:$0xff]
      %v293 = vld [vmem:[%s274 + $0x50] sm:$0xff]
      %v294 = vld [vmem:[%s274 + $0x58] sm:$0xff]
      %v295 = vld [vmem:[%s274 + $0x60] sm:$0xff]
      %v296 = vld [vmem:[%s274 + $0x68] sm:$0xff]
      %v297 = vld [vmem:[%s274 + $0x70] sm:$0xff]
      %v298 = vld [vmem:[%s274 + $0x78] sm:$0xff]
      %v299 = vld [vmem:[%s274 + $0x80] sm:$0xff]
      %v300 = vld [vmem:[%s274 + $0x88] sm:$0xff]
      %v301 = vld [vmem:[%s274 + $0x90] sm:$0xff]
      %v302 = vld [vmem:[%s274 + $0x98] sm:$0xff]
      %v303 = vld [vmem:[%s274 + $0xa0] sm:$0xff]
      %v304 = vld [vmem:[%s274 + $0xa8] sm:$0xff]
      %v305 = vld [vmem:[%s274 + $0xb0] sm:$0xff]
      %v306 = vld [vmem:[%s274 + $0xb8] sm:$0xff]
      %v307 = vld [vmem:[%s274 + $0xc0] sm:$0xff]
      %v308 = vld [vmem:[%s274 + $0xc8] sm:$0xff]
      %v309 = vld [vmem:[%s274 + $0xd0] sm:$0xff]
      %v310 = vld [vmem:[%s274 + $0xd8] sm:$0xff]
      %v311 = vld [vmem:[%s274 + $0xe0] sm:$0xff]
      %v312 = vld [vmem:[%s274 + $0xe8] sm:$0xff]
      %v313 = vld [vmem:[%s274 + $0xf0] sm:$0xff]
      %v314 = vld [vmem:[%s274 + $0xf8] sm:$0xff]
      %v315 = vpack.c.bf16 %v284, %v283
      %v316 = vpack.c.bf16 %v286, %v285
      %v317 = vpack.c.bf16 %v288, %v287
      %v318 = vpack.c.bf16 %v290, %v289
      %v319 = vpack.c.bf16 %v292, %v291
      %v320 = vpack.c.bf16 %v294, %v293
      %v321 = vpack.c.bf16 %v296, %v295
      %v322 = vpack.c.bf16 %v298, %v297
      %v323 = vpack.c.bf16 %v300, %v299
      %v324 = vpack.c.bf16 %v302, %v301
      %v325 = vpack.c.bf16 %v304, %v303
      %v326 = vpack.c.bf16 %v306, %v305
      %v327 = vpack.c.bf16 %v308, %v307
      %v328 = vpack.c.bf16 %v310, %v309
      %v329 = vpack.c.bf16 %v312, %v311
      %v330 = vpack.c.bf16 %v314, %v313
      %v331 = vld [vmem:[%s1] sm:$0xff]
      %v332 = vld [vmem:[%s1 + $0x8] sm:$0xff]
      %v333 = vld [vmem:[%s1 + $0x10] sm:$0xff]
      %v334 = vld [vmem:[%s1 + $0x18] sm:$0xff]
      %v335 = vld [vmem:[%s1 + $0x20] sm:$0xff]
      %v336 = vld [vmem:[%s1 + $0x28] sm:$0xff]
      %v337 = vld [vmem:[%s1 + $0x30] sm:$0xff]
      %v338 = vld [vmem:[%s1 + $0x38] sm:$0xff]
      %v339 = vld [vmem:[%s2] sm:$0x3]
      %v341 = vperm.slane %v339, 0
      %v342 = vperm.slane %v339, 1
      %v353 = vunpack.c.l.b16 %v331
      %v354 = vunpack.c.h.b16 %v331
      %v355 = vunpack.c.l.b16 %v332
      %v356 = vunpack.c.h.b16 %v332
      %v357 = vunpack.c.l.b16 %v333
      %v358 = vunpack.c.h.b16 %v333
      %v359 = vunpack.c.l.b16 %v334
      %v360 = vunpack.c.h.b16 %v334
      %v361 = vunpack.c.l.b16 %v335
      %v362 = vunpack.c.h.b16 %v335
      %v363 = vunpack.c.l.b16 %v336
      %v364 = vunpack.c.h.b16 %v336
      %v365 = vunpack.c.l.b16 %v337
      %v366 = vunpack.c.h.b16 %v337
      %v367 = vunpack.c.l.b16 %v338
      %v368 = vunpack.c.h.b16 %v338
      %v369 = vpack.c.b16 %v355, %v353
      %v370 = vpack.c.b16 %v356, %v354
      %v371 = vpack.c.b16 %v359, %v357
      %v372 = vpack.c.b16 %v360, %v358
      %v373 = vpack.c.b16 %v363, %v361
      %v374 = vpack.c.b16 %v364, %v362
      %v375 = vpack.c.b16 %v367, %v365
      %v376 = vpack.c.b16 %v368, %v366
      %vm385 = vcmask 523264
      %v387 = vsel %vm385, %v315, 0
      %v390 = vsel %vm385, %v316, 0
      %v393 = vsel %vm385, %v317, 0
      %v396 = vsel %vm385, %v318, 0
      %v399 = vsel %vm385, %v319, 0
      %v402 = vsel %vm385, %v320, 0
      %v405 = vsel %vm385, %v321, 0
      %v408 = vsel %vm385, %v322, 0
      %v411 = vsel %vm385, %v323, 0
      %v414 = vsel %vm385, %v324, 0
      %v417 = vsel %vm385, %v325, 0
      %v420 = vsel %vm385, %v326, 0
      %v423 = vsel %vm385, %v327, 0
      %v426 = vsel %vm385, %v328, 0
      %v429 = vsel %vm385, %v329, 0
      %v432 = vsel %vm385, %v330, 0
      %434 = vmatpush.bf16.msra.mxu0 0
      %435 = vmatpush.bf16.msra.mxu0 0
      %436 = vmatpush.bf16.msra.mxu0 0
      %437 = vmatpush.bf16.msra.mxu0 0
      %438 = vmatpush.bf16.msra.mxu0 %v375
      %439 = vmatpush.bf16.msra.mxu0 %v373
      %440 = vmatpush.bf16.msra.mxu0 %v371
      %441 = vmatpush.bf16.msra.mxu0 %v369
      %442 = vmatmul.bf16.gmra.mxu0 %v387
      %v443 = vpop.f32.mrf.mxu0
      %v444 = vadd.f32 %v341, %v443
      %v445 = vpop.f32.mrf.mxu0
      %v446 = vadd.f32 %v341, %v445
      %447 = vmatmul.bf16.gmra.mxu0 %v390
      %v448 = vpop.f32.mrf.mxu0
      %v449 = vadd.f32 %v341, %v448
      %v450 = vpop.f32.mrf.mxu0
      %v451 = vadd.f32 %v341, %v450
      %452 = vmatmul.bf16.gmra.mxu0 %v393
      %v453 = vpop.f32.mrf.mxu0
      %v454 = vadd.f32 %v341, %v453
      %v455 = vpop.f32.mrf.mxu0
      %v456 = vadd.f32 %v341, %v455
      %457 = vmatmul.bf16.gmra.mxu0 %v396
      %v458 = vpop.f32.mrf.mxu0
      %v459 = vadd.f32 %v341, %v458
      %v460 = vpop.f32.mrf.mxu0
      %v461 = vadd.f32 %v341, %v460
      %462 = vmatmul.bf16.gmra.mxu0 %v399
      %v463 = vpop.f32.mrf.mxu0
      %v464 = vadd.f32 %v341, %v463
      %v465 = vpop.f32.mrf.mxu0
      %v466 = vadd.f32 %v341, %v465
      %467 = vmatmul.bf16.gmra.mxu0 %v402
      %v468 = vpop.f32.mrf.mxu0
      %v469 = vadd.f32 %v341, %v468
      %v470 = vpop.f32.mrf.mxu0
      %v471 = vadd.f32 %v341, %v470
      %472 = vmatmul.bf16.gmra.mxu0 %v405
      %v473 = vpop.f32.mrf.mxu0
      %v474 = vadd.f32 %v341, %v473
      %v475 = vpop.f32.mrf.mxu0
      %v476 = vadd.f32 %v341, %v475
      %477 = vmatmul.bf16.gmra.mxu0 %v408
      %v478 = vpop.f32.mrf.mxu0
      %v479 = vadd.f32 %v341, %v478
      %v480 = vpop.f32.mrf.mxu0
      %v481 = vadd.f32 %v341, %v480
      %482 = vmatmul.bf16.gmra.mxu0 %v411
      %v483 = vpop.f32.mrf.mxu0
      %v484 = vadd.f32 %v341, %v483
      %v485 = vpop.f32.mrf.mxu0
      %v486 = vadd.f32 %v341, %v485
      %487 = vmatmul.bf16.gmra.mxu0 %v414
      %v488 = vpop.f32.mrf.mxu0
      %v489 = vadd.f32 %v341, %v488
      %v490 = vpop.f32.mrf.mxu0
      %v491 = vadd.f32 %v341, %v490
      %492 = vmatmul.bf16.gmra.mxu0 %v417
      %v493 = vpop.f32.mrf.mxu0
      %v494 = vadd.f32 %v341, %v493
      %v495 = vpop.f32.mrf.mxu0
      %v496 = vadd.f32 %v341, %v495
      %497 = vmatmul.bf16.gmra.mxu0 %v420
      %v498 = vpop.f32.mrf.mxu0
      %v499 = vadd.f32 %v341, %v498
      %v500 = vpop.f32.mrf.mxu0
      %v501 = vadd.f32 %v341, %v500
      %502 = vmatmul.bf16.gmra.mxu0 %v423
      %v503 = vpop.f32.mrf.mxu0
      %v504 = vadd.f32 %v341, %v503
      %v505 = vpop.f32.mrf.mxu0
      %v506 = vadd.f32 %v341, %v505
      %507 = vmatmul.bf16.gmra.mxu0 %v426
      %v508 = vpop.f32.mrf.mxu0
      %v509 = vadd.f32 %v341, %v508
      %v510 = vpop.f32.mrf.mxu0
      %v511 = vadd.f32 %v341, %v510
      %512 = vmatmul.bf16.gmra.mxu0 %v429
      %v513 = vpop.f32.mrf.mxu0
      %v514 = vadd.f32 %v341, %v513
      %v515 = vpop.f32.mrf.mxu0
      %v516 = vadd.f32 %v341, %v515
      %517 = vmatmul.bf16.gmra.mxu0 %v432
      %v518 = vpop.f32.mrf.mxu0
      %v519 = vadd.f32 %v341, %v518
      %v520 = vpop.f32.mrf.mxu0
      %v521 = vadd.f32 %v341, %v520
      %522 = vdwg.mxu0
      %523 = vmatpush.bf16.msra.mxu0 0
      %524 = vmatpush.bf16.msra.mxu0 0
      %525 = vmatpush.bf16.msra.mxu0 0
      %526 = vmatpush.bf16.msra.mxu0 0
      %527 = vmatpush.bf16.msra.mxu0 %v376
      %528 = vmatpush.bf16.msra.mxu0 %v374
      %529 = vmatpush.bf16.msra.mxu0 %v372
      %530 = vmatpush.bf16.msra.mxu0 %v370
      %531 = vmatmul.bf16.gmra.mxu0 %v387
      %v532 = vpop.f32.mrf.mxu0
      %v533 = vadd.f32 %v342, %v532
      %v534 = vpop.f32.mrf.mxu0
      %v535 = vadd.f32 %v342, %v534
      %536 = vmatmul.bf16.gmra.mxu0 %v390
      %v537 = vpop.f32.mrf.mxu0
      %v538 = vadd.f32 %v342, %v537
      %v539 = vpop.f32.mrf.mxu0
      %v540 = vadd.f32 %v342, %v539
      %541 = vmatmul.bf16.gmra.mxu0 %v393
      %v542 = vpop.f32.mrf.mxu0
      %v543 = vadd.f32 %v342, %v542
      %v544 = vpop.f32.mrf.mxu0
      %v545 = vadd.f32 %v342, %v544
      %546 = vmatmul.bf16.gmra.mxu0 %v396
      %v547 = vpop.f32.mrf.mxu0
      %v548 = vadd.f32 %v342, %v547
      %v549 = vpop.f32.mrf.mxu0
      %v550 = vadd.f32 %v342, %v549
      %551 = vmatmul.bf16.gmra.mxu0 %v399
      %v552 = vpop.f32.mrf.mxu0
      %v553 = vadd.f32 %v342, %v552
      %v554 = vpop.f32.mrf.mxu0
      %v555 = vadd.f32 %v342, %v554
      %556 = vmatmul.bf16.gmra.mxu0 %v402
      %v557 = vpop.f32.mrf.mxu0
      %v558 = vadd.f32 %v342, %v557
      %v559 = vpop.f32.mrf.mxu0
      %v560 = vadd.f32 %v342, %v559
      %561 = vmatmul.bf16.gmra.mxu0 %v405
      %v562 = vpop.f32.mrf.mxu0
      %v563 = vadd.f32 %v342, %v562
      %v564 = vpop.f32.mrf.mxu0
      %v565 = vadd.f32 %v342, %v564
      %566 = vmatmul.bf16.gmra.mxu0 %v408
      %v567 = vpop.f32.mrf.mxu0
      %v568 = vadd.f32 %v342, %v567
      %v569 = vpop.f32.mrf.mxu0
      %v570 = vadd.f32 %v342, %v569
      %571 = vmatmul.bf16.gmra.mxu0 %v411
      %v572 = vpop.f32.mrf.mxu0
      %v573 = vadd.f32 %v342, %v572
      %v574 = vpop.f32.mrf.mxu0
      %v575 = vadd.f32 %v342, %v574
      %576 = vmatmul.bf16.gmra.mxu0 %v414
      %v577 = vpop.f32.mrf.mxu0
      %v578 = vadd.f32 %v342, %v577
      %v579 = vpop.f32.mrf.mxu0
      %v580 = vadd.f32 %v342, %v579
      %581 = vmatmul.bf16.gmra.mxu0 %v417
      %v582 = vpop.f32.mrf.mxu0
      %v583 = vadd.f32 %v342, %v582
      %v584 = vpop.f32.mrf.mxu0
      %v585 = vadd.f32 %v342, %v584
      %586 = vmatmul.bf16.gmra.mxu0 %v420
      %v587 = vpop.f32.mrf.mxu0
      %v588 = vadd.f32 %v342, %v587
      %v589 = vpop.f32.mrf.mxu0
      %v590 = vadd.f32 %v342, %v589
      %591 = vmatmul.bf16.gmra.mxu0 %v423
      %v592 = vpop.f32.mrf.mxu0
      %v593 = vadd.f32 %v342, %v592
      %v594 = vpop.f32.mrf.mxu0
      %v595 = vadd.f32 %v342, %v594
      %596 = vmatmul.bf16.gmra.mxu0 %v426
      %v597 = vpop.f32.mrf.mxu0
      %v598 = vadd.f32 %v342, %v597
      %v599 = vpop.f32.mrf.mxu0
      %v600 = vadd.f32 %v342, %v599
      %601 = vmatmul.bf16.gmra.mxu0 %v429
      %v602 = vpop.f32.mrf.mxu0
      %v603 = vadd.f32 %v342, %v602
      %v604 = vpop.f32.mrf.mxu0
      %v605 = vadd.f32 %v342, %v604
      %606 = vmatmul.bf16.gmra.mxu0 %v432
      %v607 = vpop.f32.mrf.mxu0
      %v608 = vadd.f32 %v342, %v607
      %v609 = vpop.f32.mrf.mxu0
      %v610 = vadd.f32 %v342, %v609
      %611 = vdwg.mxu0
      %v612 = vmax.f32 %v444, 0.0
      %v613 = vmax.f32 %v446, 0.0
      %v614 = vmax.f32 %v449, 0.0
      %v615 = vmax.f32 %v451, 0.0
      %v616 = vmax.f32 %v454, 0.0
      %v617 = vmax.f32 %v456, 0.0
      %v618 = vmax.f32 %v459, 0.0
      %v619 = vmax.f32 %v461, 0.0
      %v620 = vmax.f32 %v464, 0.0
      %v621 = vmax.f32 %v466, 0.0
      %v622 = vmax.f32 %v469, 0.0
      %v623 = vmax.f32 %v471, 0.0
      %v624 = vmax.f32 %v474, 0.0
      %v625 = vmax.f32 %v476, 0.0
      %v626 = vmax.f32 %v479, 0.0
      %v627 = vmax.f32 %v481, 0.0
      %v628 = vmax.f32 %v484, 0.0
      %v629 = vmax.f32 %v486, 0.0
      %v630 = vmax.f32 %v489, 0.0
      %v631 = vmax.f32 %v491, 0.0
      %v632 = vmax.f32 %v494, 0.0
      %v633 = vmax.f32 %v496, 0.0
      %v634 = vmax.f32 %v499, 0.0
      %v635 = vmax.f32 %v501, 0.0
      %v636 = vmax.f32 %v504, 0.0
      %v637 = vmax.f32 %v506, 0.0
      %v638 = vmax.f32 %v509, 0.0
      %v639 = vmax.f32 %v511, 0.0
      %v640 = vmax.f32 %v514, 0.0
      %v641 = vmax.f32 %v516, 0.0
      %v642 = vmax.f32 %v519, 0.0
      %v643 = vmax.f32 %v521, 0.0
      %v644 = vpack.c.bf16 %v613, %v612
      %v645 = vpack.c.bf16 %v615, %v614
      %v646 = vpack.c.bf16 %v617, %v616
      %v647 = vpack.c.bf16 %v619, %v618
      %v648 = vpack.c.bf16 %v621, %v620
      %v649 = vpack.c.bf16 %v623, %v622
      %v650 = vpack.c.bf16 %v625, %v624
      %v651 = vpack.c.bf16 %v627, %v626
      %v652 = vpack.c.bf16 %v629, %v628
      %v653 = vpack.c.bf16 %v631, %v630
      %v654 = vpack.c.bf16 %v633, %v632
      %v655 = vpack.c.bf16 %v635, %v634
      %v656 = vpack.c.bf16 %v637, %v636
      %v657 = vpack.c.bf16 %v639, %v638
      %v658 = vpack.c.bf16 %v641, %v640
      %v659 = vpack.c.bf16 %v643, %v642
      %v660 = vld [vmem:[%s3] sm:$0xf]
      %v661 = vld [vmem:[%s3 + $0x4] sm:$0xf]
      %v662 = vld [vmem:[%s3 + $0x8] sm:$0xf]
      %v663 = vld [vmem:[%s3 + $0xc] sm:$0xf]
      %v664 = vld [vmem:[%s3 + $0x10] sm:$0xf]
      %v665 = vld [vmem:[%s3 + $0x14] sm:$0xf]
      %v666 = vld [vmem:[%s3 + $0x18] sm:$0xf]
      %v667 = vld [vmem:[%s3 + $0x1c] sm:$0xf]
      %v668 = vld [vmem:[%s3 + $0x20] sm:$0xf]
      %v669 = vld [vmem:[%s3 + $0x24] sm:$0xf]
      %v670 = vld [vmem:[%s3 + $0x28] sm:$0xf]
      %v671 = vld [vmem:[%s3 + $0x2c] sm:$0xf]
      %v672 = vld [vmem:[%s3 + $0x30] sm:$0xf]
      %v673 = vld [vmem:[%s3 + $0x34] sm:$0xf]
      %v674 = vld [vmem:[%s3 + $0x38] sm:$0xf]
      %v675 = vld [vmem:[%s3 + $0x3c] sm:$0xf]
      %v676 = vld [vmem:[%s4] sm:$0x1]
      %v678 = vperm.slane %v676, 0
      %v696 = vunpack.c.l.b16 %v660
      %v697 = vunpack.c.l.b16 %v661
      %v698 = vunpack.c.l.b16 %v662
      %v699 = vunpack.c.l.b16 %v663
      %v700 = vunpack.c.l.b16 %v664
      %v701 = vunpack.c.l.b16 %v665
      %v702 = vunpack.c.l.b16 %v666
      %v703 = vunpack.c.l.b16 %v667
      %v704 = vunpack.c.l.b16 %v668
      %v705 = vunpack.c.l.b16 %v669
      %v706 = vunpack.c.l.b16 %v670
      %v707 = vunpack.c.l.b16 %v671
      %v708 = vunpack.c.l.b16 %v672
      %v709 = vunpack.c.l.b16 %v673
      %v710 = vunpack.c.l.b16 %v674
      %v711 = vunpack.c.l.b16 %v675
      %v712 = vpack.c.b16 %v697, %v696
      %v713 = vpack.c.b16 %v699, %v698
      %v714 = vpack.c.b16 %v701, %v700
      %v715 = vpack.c.b16 %v703, %v702
      %v716 = vpack.c.b16 %v705, %v704
      %v717 = vpack.c.b16 %v707, %v706
      %v718 = vpack.c.b16 %v709, %v708
      %v719 = vpack.c.b16 %v711, %v710
      %728 = vmatpush.bf16.msra.mxu0 %v719
      %729 = vmatpush.bf16.msra.mxu0 %v718
      %730 = vmatpush.bf16.msra.mxu0 %v717
      %731 = vmatpush.bf16.msra.mxu0 %v716
      %732 = vmatpush.bf16.msra.mxu0 %v715
      %733 = vmatpush.bf16.msra.mxu0 %v714
      %734 = vmatpush.bf16.msra.mxu0 %v713
      %735 = vmatpush.bf16.msra.mxu0 %v712
      %736 = vmatmul.bf16.gmra.mxu0 %v644
      %v737 = vpop.f32.mrf.mxu0
      %v738 = vadd.f32 %v678, %v737
      %v739 = vpop.f32.mrf.mxu0
      %v740 = vadd.f32 %v678, %v739
      %741 = vmatmul.bf16.gmra.mxu0 %v645
      %v742 = vpop.f32.mrf.mxu0
      %v743 = vadd.f32 %v678, %v742
      %v744 = vpop.f32.mrf.mxu0
      %v745 = vadd.f32 %v678, %v744
      %746 = vmatmul.bf16.gmra.mxu0 %v646
      %v747 = vpop.f32.mrf.mxu0
      %v748 = vadd.f32 %v678, %v747
      %v749 = vpop.f32.mrf.mxu0
      %v750 = vadd.f32 %v678, %v749
      %751 = vmatmul.bf16.gmra.mxu0 %v647
      %v752 = vpop.f32.mrf.mxu0
      %v753 = vadd.f32 %v678, %v752
      %v754 = vpop.f32.mrf.mxu0
      %v755 = vadd.f32 %v678, %v754
      %756 = vmatmul.bf16.gmra.mxu0 %v648
      %v757 = vpop.f32.mrf.mxu0
      %v758 = vadd.f32 %v678, %v757
      %v759 = vpop.f32.mrf.mxu0
      %v760 = vadd.f32 %v678, %v759
      %761 = vmatmul.bf16.gmra.mxu0 %v649
      %v762 = vpop.f32.mrf.mxu0
      %v763 = vadd.f32 %v678, %v762
      %v764 = vpop.f32.mrf.mxu0
      %v765 = vadd.f32 %v678, %v764
      %766 = vmatmul.bf16.gmra.mxu0 %v650
      %v767 = vpop.f32.mrf.mxu0
      %v768 = vadd.f32 %v678, %v767
      %v769 = vpop.f32.mrf.mxu0
      %v770 = vadd.f32 %v678, %v769
      %771 = vmatmul.bf16.gmra.mxu0 %v651
      %v772 = vpop.f32.mrf.mxu0
      %v773 = vadd.f32 %v678, %v772
      %v774 = vpop.f32.mrf.mxu0
      %v775 = vadd.f32 %v678, %v774
      %776 = vmatmul.bf16.gmra.mxu0 %v652
      %v777 = vpop.f32.mrf.mxu0
      %v778 = vadd.f32 %v678, %v777
      %v779 = vpop.f32.mrf.mxu0
      %v780 = vadd.f32 %v678, %v779
      %781 = vmatmul.bf16.gmra.mxu0 %v653
      %v782 = vpop.f32.mrf.mxu0
      %v783 = vadd.f32 %v678, %v782
      %v784 = vpop.f32.mrf.mxu0
      %v785 = vadd.f32 %v678, %v784
      %786 = vmatmul.bf16.gmra.mxu0 %v654
      %v787 = vpop.f32.mrf.mxu0
      %v788 = vadd.f32 %v678, %v787
      %v789 = vpop.f32.mrf.mxu0
      %v790 = vadd.f32 %v678, %v789
      %791 = vmatmul.bf16.gmra.mxu0 %v655
      %v792 = vpop.f32.mrf.mxu0
      %v793 = vadd.f32 %v678, %v792
      %v794 = vpop.f32.mrf.mxu0
      %v795 = vadd.f32 %v678, %v794
      %796 = vmatmul.bf16.gmra.mxu0 %v656
      %v797 = vpop.f32.mrf.mxu0
      %v798 = vadd.f32 %v678, %v797
      %v799 = vpop.f32.mrf.mxu0
      %v800 = vadd.f32 %v678, %v799
      %801 = vmatmul.bf16.gmra.mxu0 %v657
      %v802 = vpop.f32.mrf.mxu0
      %v803 = vadd.f32 %v678, %v802
      %v804 = vpop.f32.mrf.mxu0
      %v805 = vadd.f32 %v678, %v804
      %806 = vmatmul.bf16.gmra.mxu0 %v658
      %v807 = vpop.f32.mrf.mxu0
      %v808 = vadd.f32 %v678, %v807
      %v809 = vpop.f32.mrf.mxu0
      %v810 = vadd.f32 %v678, %v809
      %811 = vmatmul.bf16.gmra.mxu0 %v659
      %v812 = vpop.f32.mrf.mxu0
      %v813 = vadd.f32 %v678, %v812
      %v814 = vpop.f32.mrf.mxu0
      %v815 = vadd.f32 %v678, %v814
      %816 = vdwg.mxu0
      %v817 = vmax.f32 %v738, 0.0
      %v818 = vmax.f32 %v740, 0.0
      %v819 = vmax.f32 %v743, 0.0
      %v820 = vmax.f32 %v745, 0.0
      %v821 = vmax.f32 %v748, 0.0
      %v822 = vmax.f32 %v750, 0.0
      %v823 = vmax.f32 %v753, 0.0
      %v824 = vmax.f32 %v755, 0.0
      %v825 = vmax.f32 %v758, 0.0
      %v826 = vmax.f32 %v760, 0.0
      %v827 = vmax.f32 %v763, 0.0
      %v828 = vmax.f32 %v765, 0.0
      %v829 = vmax.f32 %v768, 0.0
      %v830 = vmax.f32 %v770, 0.0
      %v831 = vmax.f32 %v773, 0.0
      %v832 = vmax.f32 %v775, 0.0
      %v833 = vmax.f32 %v778, 0.0
      %v834 = vmax.f32 %v780, 0.0
      %v835 = vmax.f32 %v783, 0.0
      %v836 = vmax.f32 %v785, 0.0
      %v837 = vmax.f32 %v788, 0.0
      %v838 = vmax.f32 %v790, 0.0
      %v839 = vmax.f32 %v793, 0.0
      %v840 = vmax.f32 %v795, 0.0
      %v841 = vmax.f32 %v798, 0.0
      %v842 = vmax.f32 %v800, 0.0
      %v843 = vmax.f32 %v803, 0.0
      %v844 = vmax.f32 %v805, 0.0
      %v845 = vmax.f32 %v808, 0.0
      %v846 = vmax.f32 %v810, 0.0
      %v847 = vmax.f32 %v813, 0.0
      %v848 = vmax.f32 %v815, 0.0
      %v849 = vpack.c.bf16 %v818, %v817
      %v850 = vpack.c.bf16 %v820, %v819
      %v851 = vpack.c.bf16 %v822, %v821
      %v852 = vpack.c.bf16 %v824, %v823
      %v853 = vpack.c.bf16 %v826, %v825
      %v854 = vpack.c.bf16 %v828, %v827
      %v855 = vpack.c.bf16 %v830, %v829
      %v856 = vpack.c.bf16 %v832, %v831
      %v857 = vpack.c.bf16 %v834, %v833
      %v858 = vpack.c.bf16 %v836, %v835
      %v859 = vpack.c.bf16 %v838, %v837
      %v860 = vpack.c.bf16 %v840, %v839
      %v861 = vpack.c.bf16 %v842, %v841
      %v862 = vpack.c.bf16 %v844, %v843
      %v863 = vpack.c.bf16 %v846, %v845
      %v864 = vpack.c.bf16 %v848, %v847
      %v865 = vld [vmem:[%s5] sm:$0xf]
      %v866 = vld [vmem:[%s5 + $0x4] sm:$0xf]
      %v867 = vld [vmem:[%s5 + $0x8] sm:$0xf]
      %v868 = vld [vmem:[%s5 + $0xc] sm:$0xf]
      %v869 = vld [vmem:[%s5 + $0x10] sm:$0xf]
      %v870 = vld [vmem:[%s5 + $0x14] sm:$0xf]
      %v871 = vld [vmem:[%s5 + $0x18] sm:$0xf]
      %v872 = vld [vmem:[%s5 + $0x1c] sm:$0xf]
      %v873 = vld [vmem:[%s5 + $0x20] sm:$0xf]
      %v874 = vld [vmem:[%s5 + $0x24] sm:$0xf]
      %v875 = vld [vmem:[%s5 + $0x28] sm:$0xf]
      %v876 = vld [vmem:[%s5 + $0x2c] sm:$0xf]
      %v877 = vld [vmem:[%s5 + $0x30] sm:$0xf]
      %v878 = vld [vmem:[%s5 + $0x34] sm:$0xf]
      %v879 = vld [vmem:[%s5 + $0x38] sm:$0xf]
      %v880 = vld [vmem:[%s5 + $0x3c] sm:$0xf]
      %v881 = vld [vmem:[%s6] sm:$0x1]
      %v883 = vperm.slane %v881, 0
      %v901 = vunpack.c.l.b16 %v865
      %v902 = vunpack.c.l.b16 %v866
      %v903 = vunpack.c.l.b16 %v867
      %v904 = vunpack.c.l.b16 %v868
      %v905 = vunpack.c.l.b16 %v869
      %v906 = vunpack.c.l.b16 %v870
      %v907 = vunpack.c.l.b16 %v871
      %v908 = vunpack.c.l.b16 %v872
      %v909 = vunpack.c.l.b16 %v873
      %v910 = vunpack.c.l.b16 %v874
      %v911 = vunpack.c.l.b16 %v875
      %v912 = vunpack.c.l.b16 %v876
      %v913 = vunpack.c.l.b16 %v877
      %v914 = vunpack.c.l.b16 %v878
      %v915 = vunpack.c.l.b16 %v879
      %v916 = vunpack.c.l.b16 %v880
      %v917 = vpack.c.b16 %v902, %v901
      %v918 = vpack.c.b16 %v904, %v903
      %v919 = vpack.c.b16 %v906, %v905
      %v920 = vpack.c.b16 %v908, %v907
      %v921 = vpack.c.b16 %v910, %v909
      %v922 = vpack.c.b16 %v912, %v911
      %v923 = vpack.c.b16 %v914, %v913
      %v924 = vpack.c.b16 %v916, %v915
      %933 = vmatpush.bf16.msra.mxu0 %v924
      %934 = vmatpush.bf16.msra.mxu0 %v923
      %935 = vmatpush.bf16.msra.mxu0 %v922
      %936 = vmatpush.bf16.msra.mxu0 %v921
      %937 = vmatpush.bf16.msra.mxu0 %v920
      %938 = vmatpush.bf16.msra.mxu0 %v919
      %939 = vmatpush.bf16.msra.mxu0 %v918
      %940 = vmatpush.bf16.msra.mxu0 %v917
      %941 = vmatmul.bf16.gmra.mxu0 %v849
      %v942 = vpop.f32.mrf.mxu0
      %v943 = vadd.f32 %v883, %v942
      %v944 = vpop.f32.mrf.mxu0
      %v945 = vadd.f32 %v883, %v944
      %946 = vmatmul.bf16.gmra.mxu0 %v850
      %v947 = vpop.f32.mrf.mxu0
      %v948 = vadd.f32 %v883, %v947
      %v949 = vpop.f32.mrf.mxu0
      %v950 = vadd.f32 %v883, %v949
      %951 = vmatmul.bf16.gmra.mxu0 %v851
      %v952 = vpop.f32.mrf.mxu0
      %v953 = vadd.f32 %v883, %v952
      %v954 = vpop.f32.mrf.mxu0
      %v955 = vadd.f32 %v883, %v954
      %956 = vmatmul.bf16.gmra.mxu0 %v852
      %v957 = vpop.f32.mrf.mxu0
      %v958 = vadd.f32 %v883, %v957
      %v959 = vpop.f32.mrf.mxu0
      %v960 = vadd.f32 %v883, %v959
      %961 = vmatmul.bf16.gmra.mxu0 %v853
      %v962 = vpop.f32.mrf.mxu0
      %v963 = vadd.f32 %v883, %v962
      %v964 = vpop.f32.mrf.mxu0
      %v965 = vadd.f32 %v883, %v964
      %966 = vmatmul.bf16.gmra.mxu0 %v854
      %v967 = vpop.f32.mrf.mxu0
      %v968 = vadd.f32 %v883, %v967
      %v969 = vpop.f32.mrf.mxu0
      %v970 = vadd.f32 %v883, %v969
      %971 = vmatmul.bf16.gmra.mxu0 %v855
      %v972 = vpop.f32.mrf.mxu0
      %v973 = vadd.f32 %v883, %v972
      %v974 = vpop.f32.mrf.mxu0
      %v975 = vadd.f32 %v883, %v974
      %976 = vmatmul.bf16.gmra.mxu0 %v856
      %v977 = vpop.f32.mrf.mxu0
      %v978 = vadd.f32 %v883, %v977
      %v979 = vpop.f32.mrf.mxu0
      %v980 = vadd.f32 %v883, %v979
      %981 = vmatmul.bf16.gmra.mxu0 %v857
      %v982 = vpop.f32.mrf.mxu0
      %v983 = vadd.f32 %v883, %v982
      %v984 = vpop.f32.mrf.mxu0
      %v985 = vadd.f32 %v883, %v984
      %986 = vmatmul.bf16.gmra.mxu0 %v858
      %v987 = vpop.f32.mrf.mxu0
      %v988 = vadd.f32 %v883, %v987
      %v989 = vpop.f32.mrf.mxu0
      %v990 = vadd.f32 %v883, %v989
      %991 = vmatmul.bf16.gmra.mxu0 %v859
      %v992 = vpop.f32.mrf.mxu0
      %v993 = vadd.f32 %v883, %v992
      %v994 = vpop.f32.mrf.mxu0
      %v995 = vadd.f32 %v883, %v994
      %996 = vmatmul.bf16.gmra.mxu0 %v860
      %v997 = vpop.f32.mrf.mxu0
      %v998 = vadd.f32 %v883, %v997
      %v999 = vpop.f32.mrf.mxu0
      %v1000 = vadd.f32 %v883, %v999
      %1001 = vmatmul.bf16.gmra.mxu0 %v861
      %v1002 = vpop.f32.mrf.mxu0
      %v1003 = vadd.f32 %v883, %v1002
      %v1004 = vpop.f32.mrf.mxu0
      %v1005 = vadd.f32 %v883, %v1004
      %1006 = vmatmul.bf16.gmra.mxu0 %v862
      %v1007 = vpop.f32.mrf.mxu0
      %v1008 = vadd.f32 %v883, %v1007
      %v1009 = vpop.f32.mrf.mxu0
      %v1010 = vadd.f32 %v883, %v1009
      %1011 = vmatmul.bf16.gmra.mxu0 %v863
      %v1012 = vpop.f32.mrf.mxu0
      %v1013 = vadd.f32 %v883, %v1012
      %v1014 = vpop.f32.mrf.mxu0
      %v1015 = vadd.f32 %v883, %v1014
      %1016 = vmatmul.bf16.gmra.mxu0 %v864
      %v1017 = vpop.f32.mrf.mxu0
      %v1018 = vadd.f32 %v883, %v1017
      %v1019 = vpop.f32.mrf.mxu0
      %v1020 = vadd.f32 %v883, %v1019
      %1021 = vdwg.mxu0
      %v1022 = vmax.f32 %v943, 0.0
      %v1023 = vmax.f32 %v945, 0.0
      %v1024 = vmax.f32 %v948, 0.0
      %v1025 = vmax.f32 %v950, 0.0
      %v1026 = vmax.f32 %v953, 0.0
      %v1027 = vmax.f32 %v955, 0.0
      %v1028 = vmax.f32 %v958, 0.0
      %v1029 = vmax.f32 %v960, 0.0
      %v1030 = vmax.f32 %v963, 0.0
      %v1031 = vmax.f32 %v965, 0.0
      %v1032 = vmax.f32 %v968, 0.0
      %v1033 = vmax.f32 %v970, 0.0
      %v1034 = vmax.f32 %v973, 0.0
      %v1035 = vmax.f32 %v975, 0.0
      %v1036 = vmax.f32 %v978, 0.0
      %v1037 = vmax.f32 %v980, 0.0
      %v1038 = vmax.f32 %v983, 0.0
      %v1039 = vmax.f32 %v985, 0.0
      %v1040 = vmax.f32 %v988, 0.0
      %v1041 = vmax.f32 %v990, 0.0
      %v1042 = vmax.f32 %v993, 0.0
      %v1043 = vmax.f32 %v995, 0.0
      %v1044 = vmax.f32 %v998, 0.0
      %v1045 = vmax.f32 %v1000, 0.0
      %v1046 = vmax.f32 %v1003, 0.0
      %v1047 = vmax.f32 %v1005, 0.0
      %v1048 = vmax.f32 %v1008, 0.0
      %v1049 = vmax.f32 %v1010, 0.0
      %v1050 = vmax.f32 %v1013, 0.0
      %v1051 = vmax.f32 %v1015, 0.0
      %v1052 = vmax.f32 %v1018, 0.0
      %v1053 = vmax.f32 %v1020, 0.0
      %v1054 = vadd.f32 %v1022, %v533
      %v1055 = vadd.f32 %v1023, %v535
      %v1056 = vadd.f32 %v1024, %v538
      %v1057 = vadd.f32 %v1025, %v540
      %v1058 = vadd.f32 %v1026, %v543
      %v1059 = vadd.f32 %v1027, %v545
      %v1060 = vadd.f32 %v1028, %v548
      %v1061 = vadd.f32 %v1029, %v550
      %v1062 = vadd.f32 %v1030, %v553
      %v1063 = vadd.f32 %v1031, %v555
      %v1064 = vadd.f32 %v1032, %v558
      %v1065 = vadd.f32 %v1033, %v560
      %v1066 = vadd.f32 %v1034, %v563
      %v1067 = vadd.f32 %v1035, %v565
      %v1068 = vadd.f32 %v1036, %v568
      %v1069 = vadd.f32 %v1037, %v570
      %v1070 = vadd.f32 %v1038, %v573
      %v1071 = vadd.f32 %v1039, %v575
      %v1072 = vadd.f32 %v1040, %v578
      %v1073 = vadd.f32 %v1041, %v580
      %v1074 = vadd.f32 %v1042, %v583
      %v1075 = vadd.f32 %v1043, %v585
      %v1076 = vadd.f32 %v1044, %v588
      %v1077 = vadd.f32 %v1045, %v590
      %v1078 = vadd.f32 %v1046, %v593
      %v1079 = vadd.f32 %v1047, %v595
      %v1080 = vadd.f32 %v1048, %v598
      %v1081 = vadd.f32 %v1049, %v600
      %v1082 = vadd.f32 %v1050, %v603
      %v1083 = vadd.f32 %v1051, %v605
      %v1084 = vadd.f32 %v1052, %v608
      %v1085 = vadd.f32 %v1053, %v610
      %vm1086 = vcmask 261120
      %1087 = vst.msk [vmem:[%s280] sm:$0xff] %vm1086, %v1054
      %1088 = vst.msk [vmem:[%s280 + $0x8] sm:$0xff] %vm1086, %v1055
      %1089 = vst.msk [vmem:[%s280 + $0x10] sm:$0xff] %vm1086, %v1056
      %1090 = vst.msk [vmem:[%s280 + $0x18] sm:$0xff] %vm1086, %v1057
      %1091 = vst.msk [vmem:[%s280 + $0x20] sm:$0xff] %vm1086, %v1058
      %1092 = vst.msk [vmem:[%s280 + $0x28] sm:$0xff] %vm1086, %v1059
      %1093 = vst.msk [vmem:[%s280 + $0x30] sm:$0xff] %vm1086, %v1060
      %1094 = vst.msk [vmem:[%s280 + $0x38] sm:$0xff] %vm1086, %v1061
      %1095 = vst.msk [vmem:[%s280 + $0x40] sm:$0xff] %vm1086, %v1062
      %1096 = vst.msk [vmem:[%s280 + $0x48] sm:$0xff] %vm1086, %v1063
      %1097 = vst.msk [vmem:[%s280 + $0x50] sm:$0xff] %vm1086, %v1064
      %1098 = vst.msk [vmem:[%s280 + $0x58] sm:$0xff] %vm1086, %v1065
      %1099 = vst.msk [vmem:[%s280 + $0x60] sm:$0xff] %vm1086, %v1066
      %1100 = vst.msk [vmem:[%s280 + $0x68] sm:$0xff] %vm1086, %v1067
      %1101 = vst.msk [vmem:[%s280 + $0x70] sm:$0xff] %vm1086, %v1068
      %1102 = vst.msk [vmem:[%s280 + $0x78] sm:$0xff] %vm1086, %v1069
      %1103 = vst.msk [vmem:[%s280 + $0x80] sm:$0xff] %vm1086, %v1070
      %1104 = vst.msk [vmem:[%s280 + $0x88] sm:$0xff] %vm1086, %v1071
      %1105 = vst.msk [vmem:[%s280 + $0x90] sm:$0xff] %vm1086, %v1072
      %1106 = vst.msk [vmem:[%s280 + $0x98] sm:$0xff] %vm1086, %v1073
      %1107 = vst.msk [vmem:[%s280 + $0xa0] sm:$0xff] %vm1086, %v1074
      %1108 = vst.msk [vmem:[%s280 + $0xa8] sm:$0xff] %vm1086, %v1075
      %1109 = vst.msk [vmem:[%s280 + $0xb0] sm:$0xff] %vm1086, %v1076
      %1110 = vst.msk [vmem:[%s280 + $0xb8] sm:$0xff] %vm1086, %v1077
      %1111 = vst.msk [vmem:[%s280 + $0xc0] sm:$0xff] %vm1086, %v1078
      %1112 = vst.msk [vmem:[%s280 + $0xc8] sm:$0xff] %vm1086, %v1079
      %1113 = vst.msk [vmem:[%s280 + $0xd0] sm:$0xff] %vm1086, %v1080
      %1114 = vst.msk [vmem:[%s280 + $0xd8] sm:$0xff] %vm1086, %v1081
      %1115 = vst.msk [vmem:[%s280 + $0xe0] sm:$0xff] %vm1086, %v1082
      %1116 = vst.msk [vmem:[%s280 + $0xe8] sm:$0xff] %vm1086, %v1083
      %1117 = vst.msk [vmem:[%s280 + $0xf0] sm:$0xff] %vm1086, %v1084
      %1118 = vst.msk [vmem:[%s280 + $0xf8] sm:$0xff] %vm1086, %v1085
      %s1119 = smul.u32 32, %s18
      %p1120 = scmp.lt.s32.totalorder %s1119, 127
      %s1121 = scalar_select %p1120, %s1119, 127
      %s1122 = smul.addr %s1121, 8
      %s1123 = scalar_lea.vmem %s7, %s1122
      // Predicated region
      $region49: #{fc_forward.1} parent=47 // pred_check
        %p1124 = pneg %p188
      $region50: #{fc_forward.1} parent=47 // pred_check_branch
        %1126 = sbr.rel (%p1124) target = $region52
      $region51: #{fc_forward.1} parent=47 // pred_region
        %s1127 = smul.u32 32, %s18
      $region52: #{fc_forward.1} parent=47 // pred_fallthru
        _
    $region48: #{fc_forward.1} parent=5 // pred_fallthru
      _
    %p1128 = scmp.le.s32.totalorder 2, %s13
    // Predicated region
    $region53: #{fc_forward.1} parent=5 // pred_check
      %p1129 = pneg %p1128
    $region54: #{fc_forward.1} parent=5 // pred_check_branch
      %1131 = sbr.rel (%p1129) target = $region56
    $region55: #{fc_forward.1} parent=5 // pred_region
      %s1132 = ssub.s32 %s13, 2
      // Predicated region
      $region57: #{fc_forward.1} parent=55 // pred_check
        %p1133 = pneg %p194
      $region58: #{fc_forward.1} parent=55 // pred_check_branch
        %1135 = sbr.rel (%p1133) target = $region60
      $region59: #{fc_forward.1} parent=55 // pred_region
        %s1136 = smul.u32 32, %s19
        %p1137 = scmp.lt.s32.totalorder %s1136, 127
        %s1138 = scalar_select %p1137, %s1136, 127
        %s1139 = smul.addr %s1138, 8
        %s1140 = scalar_lea.vmem %s7, %s1139
      $region60: #{fc_forward.1} parent=55 // pred_fallthru
        _
    $region56: #{fc_forward.1} parent=5 // pred_fallthru
      _
  $region6: #{fc_forward.1} parent=0 // loop_footer
    %s17 = sadd.s32 1, %s13
  $region7: #{fc_forward.1} parent=0 // loop_footer_branch
    %12 = sbr.rel target = $region3
  $region8: #{fc_forward.1} parent=0 // loop_exit
    _

</llo_original>
